<compile_context>
chip_gen: v6e
topology: v6e:2x2x1
jax: 0.10.0
libtpu: 0.0.40
codegen_flags: <defaults>
</compile_context>

<pallas_src>
import functools
import math

import jax
import jax.numpy as jnp
from jax.experimental import pallas as pl
from jax.experimental.pallas import tpu as pltpu


def _round_up(x: int, m: int) -> int:
    return ((x + m - 1) // m) * m


def _binary_encoder_kernel(idx_ref, diff_ref, pos_ref, out_ref):
    """out = pos_base + idx_small @ diff_blockdiag.

    idx_ref : (TL, Gp) f32  binary indices, G original rows per packed row
                            (zero-padded up to Gp along the contraction dim)
    diff_ref: (Gp, W)  f32  block-diagonal (e1 - e0), resident across the grid
    pos_ref : (TL, W)  f32  cached (pos_shifted + e0), lane-dense packed
    out_ref : (TL, W)  f32
    """
    out_ref[...] = pos_ref[...] + jnp.dot(
        idx_ref[...], diff_ref[...], preferred_element_type=jnp.float32)


def create_position_encoding(d_model: int, max_len: int) -> jnp.ndarray:
    """Transformer sinusoidal position encoding, matching the PyTorch reference."""
    position = jnp.arange(max_len, dtype=jnp.float32)[:, None]               # (L, 1)
    div_term = jnp.exp(
        jnp.arange(0, d_model, 2, dtype=jnp.float32) * (-math.log(10000.0) / d_model)
    )                                                                         # (D/2,)
    angles = position * div_term                                              # (L, D/2)
    pe = jnp.stack([jnp.sin(angles), jnp.cos(angles)], axis=-1).reshape(max_len, d_model)
    return pe.astype(jnp.float32)


def _binary_encoder_forward(binary_idx, pos_base_lane, diff_mat, *,
                            d_model, group, d_pad, max_tile_rows):
    """Jitted per-call forward.  Only binary_idx changes between calls;
    pos_base_lane / diff_mat are the cached static tables."""
    L = int(binary_idx.shape[0])
    G, Dp = group, d_pad
    W = G * Dp
    Gp = int(diff_mat.shape[0])
    Lg_cap = int(pos_base_lane.shape[0])

    # Packed sequence rows (multiple of 8 sublanes).
    Lg = _round_up(pl.cdiv(L, G), 8)
    if Lg > Lg_cap:
        raise ValueError(f"sequence length {L} exceeds cached max_length table")

    # Sequence tile: largest multiple of 8 <= VMEM budget that divides Lg.
    TL = min(Lg, max_tile_rows)
    while Lg % TL:
        TL -= 8
    grid_l = Lg // TL

    # Tiny idx matrix: (Lg, Gp) f32 — the ONLY per-call data streamed for idx.
    Lp = Lg * G
    idx_f = jnp.pad(binary_idx.astype(jnp.float32), (0, Lp - L)).reshape(Lg, G)
    idx_mat = jnp.pad(idx_f, ((0, 0), (0, Gp - G)))

    # Explicit VMEM limit so the big tiles also compile on v5e's 16 MiB
    # default scoped VMEM (<= 30 MiB keeps v6e/v7x happy too).
    tile_bytes = TL * W * 4
    vmem_needed = 2 * (2 * tile_bytes + TL * Gp * 4) + 2 * Gp * W * 4 + (2 << 20)
    vmem_limit = int(min(max(vmem_needed, 16 << 20), 30 << 20))

    # v7x: split the sequence axis across both TensorCores when there is
    # actually more than one grid step; otherwise keep plain semantics.
    sem = (pltpu.CORE_PARALLEL,) if grid_l > 1 else (pltpu.ARBITRARY,)

    out_lane = pl.pallas_call(
        _binary_encoder_kernel,
        out_shape=jax.ShapeDtypeStruct((Lg, W), jnp.float32),
        grid_spec=pl.GridSpec(
            grid=(grid_l,),
            in_specs=[
                pl.BlockSpec((TL, Gp), lambda i: (i, 0)),   # tiny idx matrix
                pl.BlockSpec((Gp, W), lambda i: (0, 0)),    # block-diag diff (resident)
                pl.BlockSpec((TL, W), lambda i: (i, 0)),    # cached pos_base rows
            ],
            out_specs=pl.BlockSpec((TL, W), lambda i: (i, 0)),
        ),
        compiler_params=pltpu.CompilerParams(
            dimension_semantics=sem,
            vmem_limit_bytes=vmem_limit),
    )(idx_mat, diff_mat, pos_base_lane)

    # Unpack lane-dense layout back to (L, D).
    return out_lane.reshape(Lp, Dp)[:L, :d_model]


class BinaryEncoderPallas:
    """Pallas-TPU equivalent of the PyTorch BinaryEncoder forward pass.

    All static tables are built once here (module-init style) and reused by
    every forward call:
      * pos_base_lane: shifted positional table (row 0 = e0, row i = e0 + pos[i-1]),
        lane-dense packed to width W = G * Dp (multiple of 128).
      * diff_mat: block-diagonal (e1 - e0) expansion matrix for the in-kernel
        idx -> embedding-delta matmul.
    """

    def __init__(self, embed_table, pos_encoding, max_length: int = 64):
        embed_table = jnp.asarray(embed_table, jnp.float32)
        pos_encoding = jnp.asarray(pos_encoding, jnp.float32)
        D = int(embed_table.shape[1])
        assert pos_encoding.shape == (max_length, D)

        # Lane-dense packing: output lane width W must be a multiple of 128.
        if D % 128 == 0:
            G, Dp = 1, D
        elif 128 % D == 0:
            G, Dp = 128 // D, D
        else:
            G, Dp = 1, _round_up(D, 128)        # pad feature dim up to 128 lanes
        W = G * Dp
        Gp = _round_up(G, 8)                    # contraction dim, sublane aligned

        e0 = embed_table[0]
        e1 = embed_table[1]

        # Shifted positional rows with e0 folded in:
        #   row 0          -> e0
        #   row i (i >= 1) -> e0 + pos[i - 1]
        pos_shift = jnp.concatenate(
            [jnp.zeros((1, D), jnp.float32), pos_encoding[: max_length - 1]], axis=0)
        pos_base = pos_shift + e0[None, :]                          # (max_length, D)

        Lg_cap = _round_up(pl.cdiv(max_length, G), 8)
        pos_base = jnp.pad(pos_base,
                           ((0, Lg_cap * G - max_length), (0, Dp - D)))
        self.pos_base_lane = pos_base.reshape(Lg_cap, W)            # cached

        diff_mat = jnp.zeros((Gp, W), jnp.float32)
        for g in range(G):                                          # block-diagonal
            diff_mat = diff_mat.at[g, g * Dp: g * Dp + D].set(e1 - e0)
        self.diff_mat = diff_mat                                    # cached

        # Per-streamed-buffer VMEM budget ~4 MiB (no hard 1024-row cap).
        max_tile_rows = max(8, ((4 << 20) // (W * 4)) // 8 * 8)

        self._fwd = jax.jit(functools.partial(
            _binary_encoder_forward,
            d_model=D, group=G, d_pad=Dp, max_tile_rows=max_tile_rows))

    def __call__(self, binary_idx):
        binary_idx = jnp.asarray(binary_idx, jnp.int32)
        return self._fwd(binary_idx, self.pos_base_lane, self.diff_mat)


def binary_encoder_reference(binary_idx, embed_table, pos_encoding):
    """Pure-JAX reference matching the PyTorch forward semantics."""
    L = binary_idx.shape[0]
    out = embed_table[binary_idx]                       # (L, D) gather
    out = out.at[1:].add(pos_encoding[: L - 1, :])
    return out


if __name__ == "__main__":
    embed_dim = 32
    max_length = 64
    b_len = 8   # length of the binary string

    key = jax.random.PRNGKey(0)
    k_table, k_bits = jax.random.split(key)

    # Deterministic parameter init (nn.Embedding default ~ N(0,1)).
    embed_table = jax.random.normal(k_table, (2, embed_dim), dtype=jnp.float32)
    pos_encoding = create_position_encoding(embed_dim, max_length)

    # Example binary input (list of 0/1 of length b_len).
    binary_idx = jax.random.bernoulli(k_bits, 0.5, (b_len,)).astype(jnp.int32)

    encoder = BinaryEncoderPallas(embed_table, pos_encoding, max_length=max_length)

    out = jax.block_until_ready(encoder(binary_idx))
    out = jax.block_until_ready(encoder(binary_idx))    # cached tables reused

    ref = binary_encoder_reference(binary_idx, embed_table, pos_encoding)
    assert out.shape == (b_len, embed_dim)
    assert jnp.allclose(out, ref, atol=1e-5, rtol=1e-5), "mismatch vs reference"

    print("KERNEL_OK")
</pallas_src>

<mosaic_0001>
module attributes {stable_mosaic.version = 11 : i64} {
  func.func @_binary_encoder_kernel(%arg0: i32, %arg1: memref<8x8xf32, #tpu.memory_space<vmem>>, %arg2: memref<8x128xf32, #tpu.memory_space<vmem>>, %arg3: memref<8x128xf32, #tpu.memory_space<vmem>>, %arg4: memref<8x128xf32, #tpu.memory_space<vmem>>) attributes {dimension_semantics = [#tpu.dimension_semantics<arbitrary>], iteration_bounds = array<i64: 1>, scalar_prefetch = 0 : i64, scratch_operands = 0 : i64, tpu.core_type = #tpu.core_type<tc>, window_params = [{transform_indices = @transform_0, window_bounds = array<i64: 8, 8>}, {pipeline_mode = #tpu.pipeline_mode<synchronous>, transform_indices = @transform_1, window_bounds = array<i64: 8, 128>}, {transform_indices = @transform_2, window_bounds = array<i64: 8, 128>}, {transform_indices = @transform_3, window_bounds = array<i64: 8, 128>}]} {
    %c0 = arith.constant 0 : index
    %c0_0 = arith.constant 0 : index
    %0 = vector.load %arg3[%c0, %c0_0] : memref<8x128xf32, #tpu.memory_space<vmem>>, vector<8x128xf32>
    %c0_1 = arith.constant 0 : index
    %c0_2 = arith.constant 0 : index
    %1 = vector.load %arg1[%c0_1, %c0_2] : memref<8x8xf32, #tpu.memory_space<vmem>>, vector<8x8xf32>
    %c0_3 = arith.constant 0 : index
    %c0_4 = arith.constant 0 : index
    %2 = vector.load %arg2[%c0_3, %c0_4] : memref<8x128xf32, #tpu.memory_space<vmem>>, vector<8x128xf32>
    %cst = arith.constant dense<0.000000e+00> : vector<8x128xf32>
    %3 = tpu.matmul %1, %2, %cst {dimension_numbers = #tpu.dot_dimension_numbers<[1], [0], [0], [1], [0, 0, 1, 1], [], []>} : vector<8x8xf32>, vector<8x128xf32>, vector<8x128xf32> -> vector<8x128xf32>
    %4 = arith.addf %0, %3 : vector<8x128xf32>
    %c0_5 = arith.constant 0 : index
    %c0_6 = arith.constant 0 : index
    %5 = vector.load %arg4[%c0_5, %c0_6] : memref<8x128xf32, #tpu.memory_space<vmem>>, vector<8x128xf32>
    tpu.vector_store %arg4[%c0_5, %c0_6], %4 {strides = array<i32>} : memref<8x128xf32, #tpu.memory_space<vmem>>, vector<8x128xf32>,
    return
  }
  func.func @transform_0(%arg0: i32) -> (i32, i32) {
    %c0_i32 = arith.constant 0 : i32
    %c0_i32_0 = arith.constant 0 : i32
    return %arg0, %c0_i32 : i32, i32
  }
  func.func @transform_1(%arg0: i32) -> (i32, i32) {
    %c0_i32 = arith.constant 0 : i32
    %c0_i32_0 = arith.constant 0 : i32
    %c0_i32_1 = arith.constant 0 : i32
    return %c0_i32, %c0_i32_0 : i32, i32
  }
  func.func @transform_2(%arg0: i32) -> (i32, i32) {
    %c0_i32 = arith.constant 0 : i32
    %c0_i32_0 = arith.constant 0 : i32
    return %arg0, %c0_i32 : i32, i32
  }
  func.func @transform_3(%arg0: i32) -> (i32, i32) {
    %c0_i32 = arith.constant 0 : i32
    %c0_i32_0 = arith.constant 0 : i32
    return %arg0, %c0_i32 : i32, i32
  }
}

</mosaic_0001>

<llo_original>
// kernel: _binary_encoder_forward.1
$region0: #{_binary_encoder_forward.1}
  #allocation0 [shape = 'u32[]', space=smem, size = 0x4, offset = 0x4, fixed_abs, tag = 'smem constant byte address 0x4 - core index']
  #allocation1 [shape = 'u32[144,128]{1,0:T(1,128)}', space=vmem, size = 0x12000, scoped, tag = 'internal scratch']
  %s0 = inlined_call_operand.vmem [shape: f32[8,8], index: 0, kind: input, shape index: {}]
  %s1 = inlined_call_operand.vmem [shape: f32[8,128], index: 1, kind: input, shape index: {}]
  %s2 = inlined_call_operand.vmem [shape: f32[16,128], index: 2, kind: input, shape index: {}]
  %s3 = inlined_call_operand.vmem [shape: f32[8,128], index: 3, kind: output, shape index: {}]
  %s4 = sld [smem:[#allocation0]]
  $region22: #{_binary_encoder_forward.1} parent=0
    _
  %s6 = ssub.s32 1, %s4
  %s7 = scalar_select 0, %s6, %s4
  // Predicated region
  $region2: #{_binary_encoder_forward.1} parent=0 // pred_check
    _
  $region3: #{_binary_encoder_forward.1} parent=0 // pred_check_branch
    %9 = sbr.rel (0) target = $region5
  $region4: #{_binary_encoder_forward.1} parent=0 // pred_region
    _
  $region5: #{_binary_encoder_forward.1} parent=0 // pred_fallthru
    _
  // Predicated region
  $region6: #{_binary_encoder_forward.1} parent=0 // pred_check
    _
  $region7: #{_binary_encoder_forward.1} parent=0 // pred_check_branch
    %11 = sbr.rel (0) target = $region9
  $region8: #{_binary_encoder_forward.1} parent=0 // pred_region
    _
  $region9: #{_binary_encoder_forward.1} parent=0 // pred_fallthru
    _
  // Predicated region
  $region10: #{_binary_encoder_forward.1} parent=0 // pred_check
    _
  $region11: #{_binary_encoder_forward.1} parent=0 // pred_check_branch
    %13 = sbr.rel (0) target = $region13
  $region12: #{_binary_encoder_forward.1} parent=0 // pred_region
    _
  $region13: #{_binary_encoder_forward.1} parent=0 // pred_fallthru
    _
  %v14 = vld [vmem:[%s2] sm:$0xff]
  %v15 = vld [vmem:[%s0] sm:$0xff]
  %v16 = vld [vmem:[%s1] sm:$0xff]
  %vm17 = vcmask 64512
  %v19 = vsel %vm17, %v15, 0
  %21 = vmatprep.subr.mxu0 0.0
  %22 = vmatpush1.msra.mxu0 0.0
  %23 = vmatprep.subr.mxu0 0.0
  %24 = vmatpush1.msra.mxu0 0.0
  %25 = vmatprep.subr.mxu0 0.0
  %26 = vmatpush1.msra.mxu0 0.0
  %27 = vmatprep.subr.mxu0 0.0
  %28 = vmatpush1.msra.mxu0 0.0
  %29 = vmatprep.subr.mxu0 0.0
  %30 = vmatpush1.msra.mxu0 0.0
  %31 = vmatprep.subr.mxu0 0.0
  %32 = vmatpush1.msra.mxu0 0.0
  %33 = vmatprep.subr.mxu0 0.0
  %34 = vmatpush1.msra.mxu0 0.0
  %35 = vmatprep.subr.mxu0 0.0
  %36 = vmatpush1.msra.mxu0 0.0
  %37 = vmatprep.subr.mxu0 0.0
  %38 = vmatpush1.msra.mxu0 0.0
  %39 = vmatprep.subr.mxu0 0.0
  %40 = vmatpush1.msra.mxu0 0.0
  %41 = vmatprep.subr.mxu0 0.0
  %42 = vmatpush1.msra.mxu0 0.0
  %43 = vmatprep.subr.mxu0 0.0
  %44 = vmatpush1.msra.mxu0 0.0
  %45 = vmatprep.subr.mxu0 0.0
  %46 = vmatpush1.msra.mxu0 0.0
  %47 = vmatprep.subr.mxu0 0.0
  %48 = vmatpush1.msra.mxu0 0.0
  %49 = vmatprep.subr.mxu0 0.0
  %50 = vmatpush1.msra.mxu0 0.0
  %51 = vmatprep.subr.mxu0 0.0
  %52 = vmatpush1.msra.mxu0 %v16
  %53 = vmatprep.subr.mxu0 0.0
  %54 = vmatpush2.msra.mxu0 0.0
  %55 = vmatprep.subr.mxu0 0.0
  %56 = vmatpush2.msra.mxu0 0.0
  %57 = vmatprep.subr.mxu0 0.0
  %58 = vmatpush2.msra.mxu0 0.0
  %59 = vmatprep.subr.mxu0 0.0
  %60 = vmatpush2.msra.mxu0 0.0
  %61 = vmatprep.subr.mxu0 0.0
  %62 = vmatpush2.msra.mxu0 0.0
  %63 = vmatprep.subr.mxu0 0.0
  %64 = vmatpush2.msra.mxu0 0.0
  %65 = vmatprep.subr.mxu0 0.0
  %66 = vmatpush2.msra.mxu0 0.0
  %67 = vmatprep.subr.mxu0 0.0
  %68 = vmatpush2.msra.mxu0 0.0
  %69 = vmatprep.subr.mxu0 0.0
  %70 = vmatpush2.msra.mxu0 0.0
  %71 = vmatprep.subr.mxu0 0.0
  %72 = vmatpush2.msra.mxu0 0.0
  %73 = vmatprep.subr.mxu0 0.0
  %74 = vmatpush2.msra.mxu0 0.0
  %75 = vmatprep.subr.mxu0 0.0
  %76 = vmatpush2.msra.mxu0 0.0
  %77 = vmatprep.subr.mxu0 0.0
  %78 = vmatpush2.msra.mxu0 0.0
  %79 = vmatprep.subr.mxu0 0.0
  %80 = vmatpush2.msra.mxu0 0.0
  %81 = vmatprep.subr.mxu0 0.0
  %82 = vmatpush2.msra.mxu0 0.0
  %83 = vmatprep.subr.mxu0 0.0
  %84 = vmatpush2.msra.mxu0 0.0
  %85 = vmatprep.mubr.f32.mxu0 0.0
  %86 = vmatmul.mubr.f32.gmra.mxu0 %v19
  %v87 = vpop.f32.mrf.mxu0
  %v88 = vadd.f32 0.0, %v87
  %v89 = vpop.f32.mrf.mxu0
  %90 = vdwg.mxu0
  %v91 = vadd.f32 %v14, %v88
  %92 = vst [vmem:[%s3] sm:$0xff] %v91
  // Predicated region
  $region14: #{_binary_encoder_forward.1} parent=0 // pred_check
    _
  $region15: #{_binary_encoder_forward.1} parent=0 // pred_check_branch
    %94 = sbr.rel (0) target = $region17
  $region16: #{_binary_encoder_forward.1} parent=0 // pred_region
    _
  $region17: #{_binary_encoder_forward.1} parent=0 // pred_fallthru
    _
  // Predicated region
  $region18: #{_binary_encoder_forward.1} parent=0 // pred_check
    _
  $region19: #{_binary_encoder_forward.1} parent=0 // pred_check_branch
    %96 = sbr.rel (0) target = $region21
  $region20: #{_binary_encoder_forward.1} parent=0 // pred_region
    _
  $region21: #{_binary_encoder_forward.1} parent=0 // pred_fallthru
    _

</llo_original>
